<compile_context>
chip_gen: v7x
topology: tpu7x:2x2x1
jax: 0.10.0
libtpu: 0.0.40
codegen_flags: <defaults>
</compile_context>

<pallas_src>
import functools

import jax
import jax.numpy as jnp
from jax.experimental import pallas as pl
from jax.experimental.pallas import tpu as pltpu

EPS = 1e-5

# Set to jnp.bfloat16 on v6e/v7x for ~2x MXU rate at real channel counts
# (f32 accumulation kept via preferred_element_type).  Left at f32 here so the
# strict numerical check against the f32 lax reference passes.
MATMUL_DTYPE = jnp.float32

_TAPS = tuple((dy, dx) for dy in (-1, 0, 1) for dx in (-1, 0, 1))
_CENTER_TAP = 4  # (dy, dx) == (0, 0)


def _instance_norm(y):
    """InstanceNorm2d (affine=False) on a (C, H*W) tile.

    Normalizes each channel over the spatial (lane) axis in a single pass
    (sum + sum-of-squares -> E[x^2] - mean^2), biased variance, eps=1e-5."""
    n = y.shape[1]
    inv_n = 1.0 / n
    s = jnp.sum(y, axis=1, keepdims=True)
    ss = jnp.sum(y * y, axis=1, keepdims=True)
    mean = s * inv_n
    var = ss * inv_n - mean * mean
    return (y - mean) * jax.lax.rsqrt(var + EPS)


def _im2col(x, masks, W):
    """Build the (9*C, H*W) im2col of a (C, H*W) tile via 9 lane rotations.

    masks: (9, H*W), 1.0 where the shifted tap stays inside the image."""
    HW = x.shape[1]
    cols = []
    for t, (dy, dx) in enumerate(_TAPS):
        k = dy * W + dx
        if k == 0:
            xs = x                                    # centre tap: no shift, all-ones mask
        else:
            xs = pltpu.roll(x, shift=(-k) % HW, axis=1) * masks[t:t + 1, :]
        cols.append(xs)
    return jnp.concatenate(cols, axis=0)              # (9*C, H*W)


def residual_block_kernel(x_ref, wc_ref, w2_ref, bd_ref, m_ref, o_ref, *, W, Cp):
    # x_ref : (1, Cin, HW)     input tile for this batch element (channel-major)
    # wc_ref: (2*Cp, 9*Cin)    conv1 weight stacked over the 1x1 downsample
    #                          weight (downsample rows only use centre-tap cols)
    # w2_ref: (Cp, 9*Cp)       conv2 weight (tap-major flattened)
    # bd_ref: (Cp, 1)          downsample 1x1 conv bias
    # m_ref : (9, HW)          per-tap validity masks
    # o_ref : (1, Cp, HW)      output tile (lane-dense: last dim = H*W)
    x = x_ref[0]                                      # (Cin, HW)
    masks = m_ref[...]                                # (9, HW)

    # ---- conv1 and downsample-1x1, fused into one MXU matmul ----
    im = _im2col(x, masks, W)                         # (9*Cin, HW)
    yd = jnp.dot(wc_ref[...].astype(MATMUL_DTYPE), im.astype(MATMUL_DTYPE),
                 preferred_element_type=jnp.float32)  # (2*Cp, HW)
    y = yd[:Cp]                                       # conv1 pre-activation
    xd = yd[Cp:] + bd_ref[...]                        # downsample pre-norm

    # ---- norm1 -> relu ----
    y = jnp.maximum(_instance_norm(y), 0.0)

    # ---- conv2 -> norm2 -> relu ----
    y = jnp.dot(w2_ref[...].astype(MATMUL_DTYPE),
                _im2col(y, masks, W).astype(MATMUL_DTYPE),
                preferred_element_type=jnp.float32)
    y = jnp.maximum(_instance_norm(y), 0.0)

    # ---- downsample norm3, residual add, final relu ----
    xd = _instance_norm(xd)
    o_ref[0] = jnp.maximum(xd + y, 0.0).astype(o_ref.dtype)


def _make_tap_masks(H, W):
    """(9, H*W) masks: 1.0 where the shifted tap reads inside the image."""
    ii = jnp.arange(H).reshape(H, 1)
    jj = jnp.arange(W).reshape(1, W)
    rows = []
    for dy, dx in _TAPS:
        valid = ((ii + dy >= 0) & (ii + dy < H) &
                 (jj + dx >= 0) & (jj + dx < W))
        rows.append(valid.astype(jnp.float32).reshape(H * W))
    return jnp.stack(rows, axis=0)


@jax.jit
def residual_block(x_nchw, w1_hwio, w2_hwio, wd, bd):
    """x_nchw: (N, Cin, H, W).  w1/w2 in HWIO, wd: (Cin, Cp), bd: (Cp,).
    Returns NCHW output (N, Cp, H, W)."""
    N, Cin, H, W = x_nchw.shape
    Cp = w1_hwio.shape[-1]
    HW = H * W

    # Channel-major, spatially flattened layouts for the kernel.
    x = x_nchw.reshape(N, Cin, HW)
    w1 = jnp.transpose(w1_hwio, (3, 0, 1, 2)).reshape(Cp, 9 * Cin)
    w2 = jnp.transpose(w2_hwio, (3, 0, 1, 2)).reshape(Cp, 9 * Cp)

    # 1x1 downsample weight embedded at the centre-tap columns, stacked under
    # the conv1 weight so both share one matmul against the same im2col.
    wd_emb = jnp.zeros((Cp, 9 * Cin), dtype=wd.dtype)
    wd_emb = wd_emb.at[:, _CENTER_TAP * Cin:(_CENTER_TAP + 1) * Cin].set(wd.T)
    w_comb = jnp.concatenate([w1, wd_emb], axis=0)    # (2*Cp, 9*Cin)

    bdk = bd.reshape(Cp, 1)
    masks = _make_tap_masks(H, W)

    kernel = functools.partial(residual_block_kernel, W=W, Cp=Cp)

    grid_spec = pltpu.PrefetchScalarGridSpec(
        num_scalar_prefetch=0,
        grid=(N,),
        in_specs=[
            pl.BlockSpec((1, Cin, HW), lambda n: (n, 0, 0)),
            pl.BlockSpec((2 * Cp, 9 * Cin), lambda n: (0, 0)),
            pl.BlockSpec((Cp, 9 * Cp), lambda n: (0, 0)),
            pl.BlockSpec((Cp, 1), lambda n: (0, 0)),
            pl.BlockSpec((9, HW), lambda n: (0, 0)),
        ],
        out_specs=pl.BlockSpec((1, Cp, HW), lambda n: (n, 0, 0)),
    )

    out = pl.pallas_call(
        kernel,
        out_shape=jax.ShapeDtypeStruct((N, Cp, HW), jnp.float32),
        grid_spec=grid_spec,
        compiler_params=pltpu.CompilerParams(
            dimension_semantics=("parallel",),
            vmem_limit_bytes=32 * 1024 * 1024),
    )(x, w_comb, w2, bdk, masks)

    return out.reshape(N, Cp, H, W)


def reference_forward(x_nchw, w1_hwio, w2_hwio, wd, bd):
    """Pure-JAX reference (lax conv) of the same forward pass, NCHW output."""
    dn = ('NHWC', 'HWIO', 'NHWC')
    x = jnp.transpose(x_nchw, (0, 2, 3, 1))

    def inorm(y):
        m = jnp.mean(y, axis=(1, 2), keepdims=True)
        v = jnp.mean(jnp.square(y - m), axis=(1, 2), keepdims=True)
        return (y - m) * jax.lax.rsqrt(v + EPS)

    y = jax.lax.conv_general_dilated(x, w1_hwio, (1, 1), ((1, 1), (1, 1)),
                                     dimension_numbers=dn)
    y = jax.nn.relu(inorm(y))
    y = jax.lax.conv_general_dilated(y, w2_hwio, (1, 1), ((1, 1), (1, 1)),
                                     dimension_numbers=dn)
    y = jax.nn.relu(inorm(y))

    Cin, Cp = wd.shape
    xd = jax.lax.conv_general_dilated(x, wd.reshape(1, 1, Cin, Cp), (1, 1),
                                      ((0, 0), (0, 0)),
                                      dimension_numbers=dn)
    xd = inorm(xd + bd.reshape(1, 1, 1, Cp))
    out = jax.nn.relu(xd + y)
    return jnp.transpose(out, (0, 3, 1, 2))


if __name__ == "__main__":
    N, Cin, H, W = 2, 4, 16, 16      # PyTorch-style NCHW sizing
    Cp = 8                           # planes != in_planes -> downsample branch

    key = jax.random.PRNGKey(0)
    kx, k1, k2, k3, k4 = jax.random.split(key, 5)

    x_nchw = jax.random.normal(kx, (N, Cin, H, W), dtype=jnp.float32)

    # Deterministic synthetic parameters (HWIO layout for the 3x3 conv weights).
    w1 = 0.1 * jax.random.normal(k1, (3, 3, Cin, Cp), dtype=jnp.float32)
    w2 = 0.1 * jax.random.normal(k2, (3, 3, Cp, Cp), dtype=jnp.float32)
    wd = 0.1 * jax.random.normal(k3, (Cin, Cp), dtype=jnp.float32)
    bd = 0.1 * jax.random.normal(k4, (Cp,), dtype=jnp.float32)

    out = residual_block(x_nchw, w1, w2, wd, bd)
    out = jax.block_until_ready(out)

    ref = reference_forward(x_nchw, w1, w2, wd, bd)
    assert out.shape == (N, Cp, H, W)
    max_err = float(jnp.max(jnp.abs(out - ref)))
    assert jnp.allclose(out, ref, atol=2e-4, rtol=2e-4), max_err

    print("KERNEL_OK")
</pallas_src>

<mosaic_0001>
module attributes {stable_mosaic.version = 11 : i64} {
  func.func @residual_block_kernel(%arg0: i32, %arg1: memref<1x4x256xf32, #tpu.memory_space<vmem>>, %arg2: memref<16x36xf32, #tpu.memory_space<vmem>>, %arg3: memref<8x72xf32, #tpu.memory_space<vmem>>, %arg4: memref<8x1xf32, #tpu.memory_space<vmem>>, %arg5: memref<9x256xf32, #tpu.memory_space<vmem>>, %arg6: memref<1x8x256xf32, #tpu.memory_space<vmem>>) attributes {dimension_semantics = [#tpu.dimension_semantics<parallel>], iteration_bounds = array<i64: 2>, scalar_prefetch = 0 : i64, scratch_operands = 0 : i64, tpu.core_type = #tpu.core_type<tc>, window_params = [{transform_indices = @transform_0, window_bounds = array<i64: 1, 4, 256>}, {pipeline_mode = #tpu.pipeline_mode<synchronous>, transform_indices = @transform_1, window_bounds = array<i64: 16, 36>}, {pipeline_mode = #tpu.pipeline_mode<synchronous>, transform_indices = @transform_2, window_bounds = array<i64: 8, 72>}, {pipeline_mode = #tpu.pipeline_mode<synchronous>, transform_indices = @transform_3, window_bounds = array<i64: 8, 1>}, {pipeline_mode = #tpu.pipeline_mode<synchronous>, transform_indices = @transform_4, window_bounds = array<i64: 9, 256>}, {transform_indices = @transform_5, window_bounds = array<i64: 1, 8, 256>}]} {
    %c0 = arith.constant 0 : index
    %c0_0 = arith.constant 0 : index
    %c0_1 = arith.constant 0 : index
    %0 = vector.load %arg1[%c0, %c0_0, %c0_1] : memref<1x4x256xf32, #tpu.memory_space<vmem>>, vector<1x4x256xf32>
    %1 = vector.shape_cast %0 : vector<1x4x256xf32> to vector<4x256xf32>
    %c0_2 = arith.constant 0 : index
    %c0_3 = arith.constant 0 : index
    %2 = vector.load %arg5[%c0_2, %c0_3] : memref<9x256xf32, #tpu.memory_space<vmem>>, vector<9x256xf32>
    %c17_i32 = arith.constant 17 : i32
    %3 = tpu.dynamic_rotate %1 by %c17_i32 dim 1 : vector<4x256xf32>, i32 -> vector<4x256xf32>
    %4 = vector.extract_strided_slice %2 {offsets = [0, 0], sizes = [1, 256], strides = [1, 1]} : vector<9x256xf32> to vector<1x256xf32>
    %5 = vector.broadcast %4 : vector<1x256xf32> to vector<4x256xf32>
    %6 = arith.mulf %3, %5 : vector<4x256xf32>
    %c16_i32 = arith.constant 16 : i32
    %7 = tpu.dynamic_rotate %1 by %c16_i32 dim 1 : vector<4x256xf32>, i32 -> vector<4x256xf32>
    %8 = vector.extract_strided_slice %2 {offsets = [1, 0], sizes = [1, 256], strides = [1, 1]} : vector<9x256xf32> to vector<1x256xf32>
    %9 = vector.broadcast %8 : vector<1x256xf32> to vector<4x256xf32>
    %10 = arith.mulf %7, %9 : vector<4x256xf32>
    %c15_i32 = arith.constant 15 : i32
    %11 = tpu.dynamic_rotate %1 by %c15_i32 dim 1 : vector<4x256xf32>, i32 -> vector<4x256xf32>
    %12 = vector.extract_strided_slice %2 {offsets = [2, 0], sizes = [1, 256], strides = [1, 1]} : vector<9x256xf32> to vector<1x256xf32>
    %13 = vector.broadcast %12 : vector<1x256xf32> to vector<4x256xf32>
    %14 = arith.mulf %11, %13 : vector<4x256xf32>
    %c1_i32 = arith.constant 1 : i32
    %15 = tpu.dynamic_rotate %1 by %c1_i32 dim 1 : vector<4x256xf32>, i32 -> vector<4x256xf32>
    %16 = vector.extract_strided_slice %2 {offsets = [3, 0], sizes = [1, 256], strides = [1, 1]} : vector<9x256xf32> to vector<1x256xf32>
    %17 = vector.broadcast %16 : vector<1x256xf32> to vector<4x256xf32>
    %18 = arith.mulf %15, %17 : vector<4x256xf32>
    %c255_i32 = arith.constant 255 : i32
    %19 = tpu.dynamic_rotate %1 by %c255_i32 dim 1 : vector<4x256xf32>, i32 -> vector<4x256xf32>
    %20 = vector.extract_strided_slice %2 {offsets = [5, 0], sizes = [1, 256], strides = [1, 1]} : vector<9x256xf32> to vector<1x256xf32>
    %21 = vector.broadcast %20 : vector<1x256xf32> to vector<4x256xf32>
    %22 = arith.mulf %19, %21 : vector<4x256xf32>
    %c241_i32 = arith.constant 241 : i32
    %23 = tpu.dynamic_rotate %1 by %c241_i32 dim 1 : vector<4x256xf32>, i32 -> vector<4x256xf32>
    %24 = vector.extract_strided_slice %2 {offsets = [6, 0], sizes = [1, 256], strides = [1, 1]} : vector<9x256xf32> to vector<1x256xf32>
    %25 = vector.broadcast %24 : vector<1x256xf32> to vector<4x256xf32>
    %26 = arith.mulf %23, %25 : vector<4x256xf32>
    %c240_i32 = arith.constant 240 : i32
    %27 = tpu.dynamic_rotate %1 by %c240_i32 dim 1 : vector<4x256xf32>, i32 -> vector<4x256xf32>
    %28 = vector.extract_strided_slice %2 {offsets = [7, 0], sizes = [1, 256], strides = [1, 1]} : vector<9x256xf32> to vector<1x256xf32>
    %29 = vector.broadcast %28 : vector<1x256xf32> to vector<4x256xf32>
    %30 = arith.mulf %27, %29 : vector<4x256xf32>
    %c239_i32 = arith.constant 239 : i32
    %31 = tpu.dynamic_rotate %1 by %c239_i32 dim 1 : vector<4x256xf32>, i32 -> vector<4x256xf32>
    %32 = vector.extract_strided_slice %2 {offsets = [8, 0], sizes = [1, 256], strides = [1, 1]} : vector<9x256xf32> to vector<1x256xf32>
    %33 = vector.broadcast %32 : vector<1x256xf32> to vector<4x256xf32>
    %34 = arith.mulf %31, %33 : vector<4x256xf32>
    %35 = tpu.concatenate %6, %10, %14, %18, %1, %22, %26, %30, %34 in 0 : vector<4x256xf32>, vector<4x256xf32>, vector<4x256xf32>, vector<4x256xf32>, vector<4x256xf32>, vector<4x256xf32>, vector<4x256xf32>, vector<4x256xf32>, vector<4x256xf32> -> vector<36x256xf32>
    %c0_4 = arith.constant 0 : index
    %c0_5 = arith.constant 0 : index
    %36 = vector.load %arg2[%c0_4, %c0_5] : memref<16x36xf32, #tpu.memory_space<vmem>>, vector<16x36xf32>
    %cst = arith.constant dense<0.000000e+00> : vector<16x256xf32>
    %37 = tpu.matmul %36, %35, %cst {dimension_numbers = #tpu.dot_dimension_numbers<[1], [0], [0], [1], [0, 0, 1, 1], [], []>} : vector<16x36xf32>, vector<36x256xf32>, vector<16x256xf32> -> vector<16x256xf32>
    %38 = vector.extract_strided_slice %37 {offsets = [0, 0], sizes = [8, 256], strides = [1, 1]} : vector<16x256xf32> to vector<8x256xf32>
    %39 = vector.extract_strided_slice %37 {offsets = [8, 0], sizes = [8, 256], strides = [1, 1]} : vector<16x256xf32> to vector<8x256xf32>
    %c0_6 = arith.constant 0 : index
    %c0_7 = arith.constant 0 : index
    %40 = vector.load %arg4[%c0_6, %c0_7] : memref<8x1xf32, #tpu.memory_space<vmem>>, vector<8x1xf32>
    %41 = vector.broadcast %40 : vector<8x1xf32> to vector<8x256xf32>
    %42 = arith.addf %39, %41 : vector<8x256xf32>
    %cst_8 = arith.constant dense<0.000000e+00> : vector<8xf32>
    %43 = vector.multi_reduction <add>, %38, %cst_8 [1] : vector<8x256xf32> to vector<8xf32>
    %44 = vector.shape_cast %43 : vector<8xf32> to vector<8x1xf32>
    %45 = arith.mulf %38, %38 : vector<8x256xf32>
    %cst_9 = arith.constant dense<0.000000e+00> : vector<8xf32>
    %46 = vector.multi_reduction <add>, %45, %cst_9 [1] : vector<8x256xf32> to vector<8xf32>
    %47 = vector.shape_cast %46 : vector<8xf32> to vector<8x1xf32>
    %cst_10 = arith.constant 3.906250e-03 : f32
    %48 = vector.broadcast %cst_10 : f32 to vector<8x1xf32>
    %49 = arith.mulf %44, %48 : vector<8x1xf32>
    %cst_11 = arith.constant 3.906250e-03 : f32
    %50 = vector.broadcast %cst_11 : f32 to vector<8x1xf32>
    %51 = arith.mulf %47, %50 : vector<8x1xf32>
    %52 = arith.mulf %49, %49 : vector<8x1xf32>
    %53 = arith.subf %51, %52 : vector<8x1xf32>
    %54 = vector.broadcast %49 : vector<8x1xf32> to vector<8x256xf32>
    %55 = arith.subf %38, %54 : vector<8x256xf32>
    %cst_12 = arith.constant 9.99999974E-6 : f32
    %56 = vector.broadcast %cst_12 : f32 to vector<8x1xf32>
    %57 = arith.addf %53, %56 : vector<8x1xf32>
    %58 = math.rsqrt %57 : vector<8x1xf32>
    %59 = vector.broadcast %58 : vector<8x1xf32> to vector<8x256xf32>
    %60 = arith.mulf %55, %59 : vector<8x256xf32>
    %cst_13 = arith.constant 0.000000e+00 : f32
    %61 = vector.broadcast %cst_13 : f32 to vector<8x256xf32>
    %62 = arith.maximumf %60, %61 : vector<8x256xf32>
    %c0_14 = arith.constant 0 : index
    %c0_15 = arith.constant 0 : index
    %63 = vector.load %arg3[%c0_14, %c0_15] : memref<8x72xf32, #tpu.memory_space<vmem>>, vector<8x72xf32>
    %c17_i32_16 = arith.constant 17 : i32
    %64 = tpu.dynamic_rotate %62 by %c17_i32_16 dim 1 : vector<8x256xf32>, i32 -> vector<8x256xf32>
    %65 = vector.extract_strided_slice %2 {offsets = [0, 0], sizes = [1, 256], strides = [1, 1]} : vector<9x256xf32> to vector<1x256xf32>
    %66 = vector.broadcast %65 : vector<1x256xf32> to vector<8x256xf32>
    %67 = arith.mulf %64, %66 : vector<8x256xf32>
    %c16_i32_17 = arith.constant 16 : i32
    %68 = tpu.dynamic_rotate %62 by %c16_i32_17 dim 1 : vector<8x256xf32>, i32 -> vector<8x256xf32>
    %69 = vector.extract_strided_slice %2 {offsets = [1, 0], sizes = [1, 256], strides = [1, 1]} : vector<9x256xf32> to vector<1x256xf32>
    %70 = vector.broadcast %69 : vector<1x256xf32> to vector<8x256xf32>
    %71 = arith.mulf %68, %70 : vector<8x256xf32>
    %c15_i32_18 = arith.constant 15 : i32
    %72 = tpu.dynamic_rotate %62 by %c15_i32_18 dim 1 : vector<8x256xf32>, i32 -> vector<8x256xf32>
    %73 = vector.extract_strided_slice %2 {offsets = [2, 0], sizes = [1, 256], strides = [1, 1]} : vector<9x256xf32> to vector<1x256xf32>
    %74 = vector.broadcast %73 : vector<1x256xf32> to vector<8x256xf32>
    %75 = arith.mulf %72, %74 : vector<8x256xf32>
    %c1_i32_19 = arith.constant 1 : i32
    %76 = tpu.dynamic_rotate %62 by %c1_i32_19 dim 1 : vector<8x256xf32>, i32 -> vector<8x256xf32>
    %77 = vector.extract_strided_slice %2 {offsets = [3, 0], sizes = [1, 256], strides = [1, 1]} : vector<9x256xf32> to vector<1x256xf32>
    %78 = vector.broadcast %77 : vector<1x256xf32> to vector<8x256xf32>
    %79 = arith.mulf %76, %78 : vector<8x256xf32>
    %c255_i32_20 = arith.constant 255 : i32
    %80 = tpu.dynamic_rotate %62 by %c255_i32_20 dim 1 : vector<8x256xf32>, i32 -> vector<8x256xf32>
    %81 = vector.extract_strided_slice %2 {offsets = [5, 0], sizes = [1, 256], strides = [1, 1]} : vector<9x256xf32> to vector<1x256xf32>
    %82 = vector.broadcast %81 : vector<1x256xf32> to vector<8x256xf32>
    %83 = arith.mulf %80, %82 : vector<8x256xf32>
    %c241_i32_21 = arith.constant 241 : i32
    %84 = tpu.dynamic_rotate %62 by %c241_i32_21 dim 1 : vector<8x256xf32>, i32 -> vector<8x256xf32>
    %85 = vector.extract_strided_slice %2 {offsets = [6, 0], sizes = [1, 256], strides = [1, 1]} : vector<9x256xf32> to vector<1x256xf32>
    %86 = vector.broadcast %85 : vector<1x256xf32> to vector<8x256xf32>
    %87 = arith.mulf %84, %86 : vector<8x256xf32>
    %c240_i32_22 = arith.constant 240 : i32
    %88 = tpu.dynamic_rotate %62 by %c240_i32_22 dim 1 : vector<8x256xf32>, i32 -> vector<8x256xf32>
    %89 = vector.extract_strided_slice %2 {offsets = [7, 0], sizes = [1, 256], strides = [1, 1]} : vector<9x256xf32> to vector<1x256xf32>
    %90 = vector.broadcast %89 : vector<1x256xf32> to vector<8x256xf32>
    %91 = arith.mulf %88, %90 : vector<8x256xf32>
    %c239_i32_23 = arith.constant 239 : i32
    %92 = tpu.dynamic_rotate %62 by %c239_i32_23 dim 1 : vector<8x256xf32>, i32 -> vector<8x256xf32>
    %93 = vector.extract_strided_slice %2 {offsets = [8, 0], sizes = [1, 256], strides = [1, 1]} : vector<9x256xf32> to vector<1x256xf32>
    %94 = vector.broadcast %93 : vector<1x256xf32> to vector<8x256xf32>
    %95 = arith.mulf %92, %94 : vector<8x256xf32>
    %96 = tpu.concatenate %67, %71, %75, %79, %62, %83, %87, %91, %95 in 0 : vector<8x256xf32>, vector<8x256xf32>, vector<8x256xf32>, vector<8x256xf32>, vector<8x256xf32>, vector<8x256xf32>, vector<8x256xf32>, vector<8x256xf32>, vector<8x256xf32> -> vector<72x256xf32>
    %cst_24 = arith.constant dense<0.000000e+00> : vector<8x256xf32>
    %97 = tpu.matmul %63, %96, %cst_24 {dimension_numbers = #tpu.dot_dimension_numbers<[1], [0], [0], [1], [0, 0, 1, 1], [], []>} : vector<8x72xf32>, vector<72x256xf32>, vector<8x256xf32> -> vector<8x256xf32>
    %cst_25 = arith.constant dense<0.000000e+00> : vector<8xf32>
    %98 = vector.multi_reduction <add>, %97, %cst_25 [1] : vector<8x256xf32> to vector<8xf32>
    %99 = vector.shape_cast %98 : vector<8xf32> to vector<8x1xf32>
    %100 = arith.mulf %97, %97 : vector<8x256xf32>
    %cst_26 = arith.constant dense<0.000000e+00> : vector<8xf32>
    %101 = vector.multi_reduction <add>, %100, %cst_26 [1] : vector<8x256xf32> to vector<8xf32>
    %102 = vector.shape_cast %101 : vector<8xf32> to vector<8x1xf32>
    %cst_27 = arith.constant 3.906250e-03 : f32
    %103 = vector.broadcast %cst_27 : f32 to vector<8x1xf32>
    %104 = arith.mulf %99, %103 : vector<8x1xf32>
    %cst_28 = arith.constant 3.906250e-03 : f32
    %105 = vector.broadcast %cst_28 : f32 to vector<8x1xf32>
    %106 = arith.mulf %102, %105 : vector<8x1xf32>
    %107 = arith.mulf %104, %104 : vector<8x1xf32>
    %108 = arith.subf %106, %107 : vector<8x1xf32>
    %109 = vector.broadcast %104 : vector<8x1xf32> to vector<8x256xf32>
    %110 = arith.subf %97, %109 : vector<8x256xf32>
    %cst_29 = arith.constant 9.99999974E-6 : f32
    %111 = vector.broadcast %cst_29 : f32 to vector<8x1xf32>
    %112 = arith.addf %108, %111 : vector<8x1xf32>
    %113 = math.rsqrt %112 : vector<8x1xf32>
    %114 = vector.broadcast %113 : vector<8x1xf32> to vector<8x256xf32>
    %115 = arith.mulf %110, %114 : vector<8x256xf32>
    %cst_30 = arith.constant 0.000000e+00 : f32
    %116 = vector.broadcast %cst_30 : f32 to vector<8x256xf32>
    %117 = arith.maximumf %115, %116 : vector<8x256xf32>
    %cst_31 = arith.constant dense<0.000000e+00> : vector<8xf32>
    %118 = vector.multi_reduction <add>, %42, %cst_31 [1] : vector<8x256xf32> to vector<8xf32>
    %119 = vector.shape_cast %118 : vector<8xf32> to vector<8x1xf32>
    %120 = arith.mulf %42, %42 : vector<8x256xf32>
    %cst_32 = arith.constant dense<0.000000e+00> : vector<8xf32>
    %121 = vector.multi_reduction <add>, %120, %cst_32 [1] : vector<8x256xf32> to vector<8xf32>
    %122 = vector.shape_cast %121 : vector<8xf32> to vector<8x1xf32>
    %cst_33 = arith.constant 3.906250e-03 : f32
    %123 = vector.broadcast %cst_33 : f32 to vector<8x1xf32>
    %124 = arith.mulf %119, %123 : vector<8x1xf32>
    %cst_34 = arith.constant 3.906250e-03 : f32
    %125 = vector.broadcast %cst_34 : f32 to vector<8x1xf32>
    %126 = arith.mulf %122, %125 : vector<8x1xf32>
    %127 = arith.mulf %124, %124 : vector<8x1xf32>
    %128 = arith.subf %126, %127 : vector<8x1xf32>
    %129 = vector.broadcast %124 : vector<8x1xf32> to vector<8x256xf32>
    %130 = arith.subf %42, %129 : vector<8x256xf32>
    %cst_35 = arith.constant 9.99999974E-6 : f32
    %131 = vector.broadcast %cst_35 : f32 to vector<8x1xf32>
    %132 = arith.addf %128, %131 : vector<8x1xf32>
    %133 = math.rsqrt %132 : vector<8x1xf32>
    %134 = vector.broadcast %133 : vector<8x1xf32> to vector<8x256xf32>
    %135 = arith.mulf %130, %134 : vector<8x256xf32>
    %136 = arith.addf %135, %117 : vector<8x256xf32>
    %cst_36 = arith.constant 0.000000e+00 : f32
    %137 = vector.broadcast %cst_36 : f32 to vector<8x256xf32>
    %138 = arith.maximumf %136, %137 : vector<8x256xf32>
    %c0_37 = arith.constant 0 : index
    %c0_38 = arith.constant 0 : index
    %c0_39 = arith.constant 0 : index
    %139 = vector.load %arg6[%c0_37, %c0_38, %c0_39] : memref<1x8x256xf32, #tpu.memory_space<vmem>>, vector<1x8x256xf32>
    %140 = vector.shape_cast %139 : vector<1x8x256xf32> to vector<8x256xf32>
    %141 = vector.shape_cast %138 : vector<8x256xf32> to vector<1x8x256xf32>
    tpu.vector_store %arg6[%c0_37, %c0_38, %c0_39], %141 {strides = array<i32>} : memref<1x8x256xf32, #tpu.memory_space<vmem>>, vector<1x8x256xf32>,
    return
  }
  func.func @transform_0(%arg0: i32) -> (i32, i32, i32) {
    %c0_i32 = arith.constant 0 : i32
    %c0_i32_0 = arith.constant 0 : i32
    %c0_i32_1 = arith.constant 0 : i32
    return %arg0, %c0_i32, %c0_i32_0 : i32, i32, i32
  }
  func.func @transform_1(%arg0: i32) -> (i32, i32) {
    %c0_i32 = arith.constant 0 : i32
    %c0_i32_0 = arith.constant 0 : i32
    %c0_i32_1 = arith.constant 0 : i32
    return %c0_i32, %c0_i32_0 : i32, i32
  }
  func.func @transform_2(%arg0: i32) -> (i32, i32) {
    %c0_i32 = arith.constant 0 : i32
    %c0_i32_0 = arith.constant 0 : i32
    %c0_i32_1 = arith.constant 0 : i32
    return %c0_i32, %c0_i32_0 : i32, i32
  }
  func.func @transform_3(%arg0: i32) -> (i32, i32) {
    %c0_i32 = arith.constant 0 : i32
    %c0_i32_0 = arith.constant 0 : i32
    %c0_i32_1 = arith.constant 0 : i32
    return %c0_i32, %c0_i32_0 : i32, i32
  }
  func.func @transform_4(%arg0: i32) -> (i32, i32) {
    %c0_i32 = arith.constant 0 : i32
    %c0_i32_0 = arith.constant 0 : i32
    %c0_i32_1 = arith.constant 0 : i32
    return %c0_i32, %c0_i32_0 : i32, i32
  }
  func.func @transform_5(%arg0: i32) -> (i32, i32, i32) {
    %c0_i32 = arith.constant 0 : i32
    %c0_i32_0 = arith.constant 0 : i32
    %c0_i32_1 = arith.constant 0 : i32
    return %arg0, %c0_i32, %c0_i32_0 : i32, i32, i32
  }
}

</mosaic_0001>

<llo_original>
// kernel: residual_block.1
$region0: #{residual_block.1}
  #allocation0 [shape = 'u32[]', space=smem, size = 0x4, offset = 0x4, fixed_abs, tag = 'smem constant byte address 0x4 - core index']
  #allocation1 [shape = 'u32[144,128]{1,0:T(1,128)}', space=vmem, size = 0x12000, scoped, tag = 'internal scratch']
  %s0 = inlined_call_operand.vmem [shape: f32[2,4,256], index: 0, kind: input, shape index: {}]
  %s1 = inlined_call_operand.vmem [shape: f32[16,36], index: 1, kind: input, shape index: {}]
  %s2 = inlined_call_operand.vmem [shape: f32[8,72], index: 2, kind: input, shape index: {}]
  %s3 = inlined_call_operand.vmem [shape: f32[8,1], index: 3, kind: input, shape index: {}]
  %s4 = inlined_call_operand.vmem [shape: f32[9,256], index: 4, kind: input, shape index: {}]
  %s5 = inlined_call_operand.vmem [shape: f32[2,8,256], index: 5, kind: output, shape index: {}]
  %s6 = sld [smem:[#allocation0]]
  $region53: #{residual_block.1} parent=0
    _
  %s8 = ssub.s32 1, %s6
  %s9 = scalar_select 0, %s8, %s6
  loop: start=0, step=1, limit=4
  $region2: #{residual_block.1} parent=0 // loop_pre_header
    _
  $region3: #{residual_block.1} parent=0 // loop_header
    %s11 = sphi 0, %s15
    %p12 = scmp.ge.s32.totalorder %s11, 4
    %s21 = sphi 0, %s23
    %s24 = sphi 0, %s21
    %s25 = sphi 0, %s24
    %s41 = sphi 0, %s25
    %s45 = sphi 0, %s45
    %s47 = sphi 0, %s45
    %s48 = sphi 0, %s47
    %s62 = sphi 0, %s48
    %s66 = sphi 0, %s66
    %s68 = sphi 0, %s66
    %s69 = sphi 0, %s68
    %s83 = sphi 0, %s69
    %s87 = sphi 0, %s87
    %s89 = sphi 0, %s87
    %s90 = sphi 0, %s89
    %s104 = sphi 0, %s90
    %s108 = sphi 0, %s108
    %s110 = sphi 0, %s108
    %s111 = sphi 0, %s110
    %s125 = sphi 0, %s111
    %s131 = sphi 0, %s133
    %s134 = sphi 0, %s131
    %s135 = sphi 0, %s134
    %s151 = sphi 0, %s135
  $region4: #{residual_block.1} parent=0 // loop_header_branch
    %14 = sbr.rel (%p12) target = $region8
  $region5: #{residual_block.1} parent=0 // loop_body
    %s16 = ssub.s32 %s11, 1
    %s17 = ssub.s32 %s11, 2
    %s18 = sadd.s32 %s11, 1
    %s19 = ssub.s32 %s11, %s18
    %p20 = scmp.eq.s32.totalorder %s19, 0
    %s22 = sadd.s32 %s21, 1
    %s23 = scalar_select %p20, %s21, %s22
    %p26 = pneg %p20
    %p27 = scmp.eq.s32.totalorder %s11, 1
    %p28 = por %p26, %p27
    %p29 = scmp.ne.s32.totalorder %s21, %s24
    %p30 = scmp.eq.s32.totalorder %s11, 0
    %p31 = por %p29, %p30
    %p32 = scmp.ne.s32.totalorder %s21, %s24
    %p33 = scmp.eq.s32.totalorder %s16, 1
    %p34 = por %p32, %p33
    %p35 = scmp.ne.s32.totalorder %s24, %s25
    %p36 = scmp.eq.s32.totalorder %s16, 0
    %p37 = por %p35, %p36
    %p38 = scmp.ne.s32.totalorder %s24, %s25
    %p39 = scmp.eq.s32.totalorder %s17, 1
    %p40 = por %p38, %p39
    %p42 = scmp.ne.s32.totalorder %s25, %s41
    %p43 = scmp.eq.s32.totalorder %s17, 0
    %p44 = por %p42, %p43
    %s46 = sadd.s32 %s45, 1
    %p49 = scmp.eq.s32.totalorder %s11, 1
    %p50 = scmp.ne.s32.totalorder %s45, %s47
    %p51 = scmp.eq.s32.totalorder %s11, 0
    %p52 = por %p50, %p51
    %p53 = scmp.ne.s32.totalorder %s45, %s47
    %p54 = scmp.eq.s32.totalorder %s16, 1
    %p55 = por %p53, %p54
    %p56 = scmp.ne.s32.totalorder %s47, %s48
    %p57 = scmp.eq.s32.totalorder %s16, 0
    %p58 = por %p56, %p57
    %p59 = scmp.ne.s32.totalorder %s47, %s48
    %p60 = scmp.eq.s32.totalorder %s17, 1
    %p61 = por %p59, %p60
    %p63 = scmp.ne.s32.totalorder %s48, %s62
    %p64 = scmp.eq.s32.totalorder %s17, 0
    %p65 = por %p63, %p64
    %s67 = sadd.s32 %s66, 1
    %p70 = scmp.eq.s32.totalorder %s11, 1
    %p71 = scmp.ne.s32.totalorder %s66, %s68
    %p72 = scmp.eq.s32.totalorder %s11, 0
    %p73 = por %p71, %p72
    %p74 = scmp.ne.s32.totalorder %s66, %s68
    %p75 = scmp.eq.s32.totalorder %s16, 1
    %p76 = por %p74, %p75
    %p77 = scmp.ne.s32.totalorder %s68, %s69
    %p78 = scmp.eq.s32.totalorder %s16, 0
    %p79 = por %p77, %p78
    %p80 = scmp.ne.s32.totalorder %s68, %s69
    %p81 = scmp.eq.s32.totalorder %s17, 1
    %p82 = por %p80, %p81
    %p84 = scmp.ne.s32.totalorder %s69, %s83
    %p85 = scmp.eq.s32.totalorder %s17, 0
    %p86 = por %p84, %p85
    %s88 = sadd.s32 %s87, 1
    %p91 = scmp.eq.s32.totalorder %s11, 1
    %p92 = scmp.ne.s32.totalorder %s87, %s89
    %p93 = scmp.eq.s32.totalorder %s11, 0
    %p94 = por %p92, %p93
    %p95 = scmp.ne.s32.totalorder %s87, %s89
    %p96 = scmp.eq.s32.totalorder %s16, 1
    %p97 = por %p95, %p96
    %p98 = scmp.ne.s32.totalorder %s89, %s90
    %p99 = scmp.eq.s32.totalorder %s16, 0
    %p100 = por %p98, %p99
    %p101 = scmp.ne.s32.totalorder %s89, %s90
    %p102 = scmp.eq.s32.totalorder %s17, 1
    %p103 = por %p101, %p102
    %p105 = scmp.ne.s32.totalorder %s90, %s104
    %p106 = scmp.eq.s32.totalorder %s17, 0
    %p107 = por %p105, %p106
    %s109 = sadd.s32 %s108, 1
    %p112 = scmp.eq.s32.totalorder %s11, 1
    %p113 = scmp.ne.s32.totalorder %s108, %s110
    %p114 = scmp.eq.s32.totalorder %s11, 0
    %p115 = por %p113, %p114
    %p116 = scmp.ne.s32.totalorder %s108, %s110
    %p117 = scmp.eq.s32.totalorder %s16, 1
    %p118 = por %p116, %p117
    %p119 = scmp.ne.s32.totalorder %s110, %s111
    %p120 = scmp.eq.s32.totalorder %s16, 0
    %p121 = por %p119, %p120
    %p122 = scmp.ne.s32.totalorder %s110, %s111
    %p123 = scmp.eq.s32.totalorder %s17, 1
    %p124 = por %p122, %p123
    %p126 = scmp.ne.s32.totalorder %s111, %s125
    %p127 = scmp.eq.s32.totalorder %s17, 0
    %p128 = por %p126, %p127
    %s129 = ssub.s32 %s11, %s18
    %p130 = scmp.eq.s32.totalorder %s129, 0
    %s132 = sadd.s32 %s131, 1
    %s133 = scalar_select %p130, %s131, %s132
    %p136 = pneg %p130
    %p137 = scmp.eq.s32.totalorder %s11, 1
    %p138 = por %p136, %p137
    %p139 = scmp.ne.s32.totalorder %s131, %s134
    %p140 = scmp.eq.s32.totalorder %s11, 0
    %p141 = por %p139, %p140
    %p142 = scmp.ne.s32.totalorder %s131, %s134
    %p143 = scmp.eq.s32.totalorder %s16, 1
    %p144 = por %p142, %p143
    %p145 = scmp.ne.s32.totalorder %s134, %s135
    %p146 = scmp.eq.s32.totalorder %s16, 0
    %p147 = por %p145, %p146
    %p148 = scmp.ne.s32.totalorder %s134, %s135
    %p149 = scmp.eq.s32.totalorder %s17, 1
    %p150 = por %p148, %p149
    %p152 = scmp.ne.s32.totalorder %s135, %s151
    %p153 = scmp.eq.s32.totalorder %s17, 0
    %p154 = por %p152, %p153
    %p155 = scmp.le.s32.totalorder 1, %s11
    %p156 = scmp.lt.s32.totalorder %s11, 3
    %p157 = pnand %p155, %p156
    %p158 = pneg %p157
    // Predicated region
    $region9: #{residual_block.1} parent=5 // pred_check
      _
    $region10: #{residual_block.1} parent=5 // pred_check_branch
      %160 = sbr.rel (%p157) target = $region12
    $region11: #{residual_block.1} parent=5 // pred_region
      %s161 = ssub.s32 %s11, 1
      // Predicated region
      $region13: #{residual_block.1} parent=11 // pred_check
        %p162 = pneg %p58
      $region14: #{residual_block.1} parent=11 // pred_check_branch
        %164 = sbr.rel (%p162) target = $region16
      $region15: #{residual_block.1} parent=11 // pred_region
        _
      $region16: #{residual_block.1} parent=11 // pred_fallthru
        _
      // Predicated region
      $region17: #{residual_block.1} parent=11 // pred_check
        %p165 = pneg %p79
      $region18: #{residual_block.1} parent=11 // pred_check_branch
        %167 = sbr.rel (%p165) target = $region20
      $region19: #{residual_block.1} parent=11 // pred_region
        _
      $region20: #{residual_block.1} parent=11 // pred_fallthru
        _
      // Predicated region
      $region21: #{residual_block.1} parent=11 // pred_check
        %p168 = pneg %p100
      $region22: #{residual_block.1} parent=11 // pred_check_branch
        %170 = sbr.rel (%p168) target = $region24
      $region23: #{residual_block.1} parent=11 // pred_region
        _
      $region24: #{residual_block.1} parent=11 // pred_fallthru
        _
      // Predicated region
      $region25: #{residual_block.1} parent=11 // pred_check
        %p171 = pneg %p121
      $region26: #{residual_block.1} parent=11 // pred_check_branch
        %173 = sbr.rel (%p171) target = $region28
      $region27: #{residual_block.1} parent=11 // pred_region
        _
      $region28: #{residual_block.1} parent=11 // pred_fallthru
        _
    $region12: #{residual_block.1} parent=5 // pred_fallthru
      _
    %p174 = scmp.lt.s32.totalorder %s11, 2
    // Predicated region
    $region29: #{residual_block.1} parent=5 // pred_check
      %p175 = pneg %p174
    $region30: #{residual_block.1} parent=5 // pred_check_branch
      %177 = sbr.rel (%p175) target = $region32
    $region31: #{residual_block.1} parent=5 // pred_region
      // Predicated region
      $region33: #{residual_block.1} parent=31 // pred_check
        %p178 = pneg %p31
      $region34: #{residual_block.1} parent=31 // pred_check_branch
        %180 = sbr.rel (%p178) target = $region36
      $region35: #{residual_block.1} parent=31 // pred_region
        %p181 = scmp.lt.s32.totalorder %s11, 1
        %s182 = scalar_select %p181, %s11, 1
        %s183 = smul.addr %s182, 2
        %s184 = smul.addr %s183, 4
        %s185 = scalar_lea.vmem %s0, %s184
      $region36: #{residual_block.1} parent=31 // pred_fallthru
        _
    $region32: #{residual_block.1} parent=5 // pred_fallthru
      _
    %p186 = scmp.le.s32.totalorder 1, %s11
    %p187 = scmp.lt.s32.totalorder %s11, 3
    %p188 = pnand %p186, %p187
    %p189 = pneg %p188
    // Predicated region
    $region37: #{residual_block.1} parent=5 // pred_check
      _
    $region38: #{residual_block.1} parent=5 // pred_check_branch
      %191 = sbr.rel (%p188) target = $region40
    $region39: #{residual_block.1} parent=5 // pred_region
      %s192 = ssub.s32 %s11, 1
      %p193 = scmp.lt.s32.totalorder %s16, 1
      %s194 = scalar_select %p193, %s16, 1
      %s195 = smul.addr %s194, 2
      %s196 = smul.addr %s195, 4
      %s197 = scalar_lea.vmem %s0, %s196
      %p198 = pneg %p37
      %p199 = pneg %p34
      %p200 = pneg %p58
      %p201 = pneg %p55
      %p202 = pneg %p79
      %p203 = pneg %p76
      %p204 = pneg %p100
      %p205 = pneg %p97
      %p206 = pneg %p121
      %p207 = pneg %p118
      %p208 = pneg %p147
      %p209 = pneg %p144
      %p210 = scmp.lt.s32.totalorder %s16, 1
      %s211 = scalar_select %p210, %s16, 1
      %s212 = smul.addr %s211, 2
      %s213 = smul.addr %s212, 8
      %s214 = scalar_lea.vmem %s5, %s213
      %p215 = scmp.lt.s32.totalorder %s16, 1
      %s216 = scalar_select %p215, %s16, 1
      %s217 = smul.addr %s216, 2
      %s218 = smul.addr %s217, 4
      %s219 = scalar_lea.vmem %s0, %s218
      %p220 = scmp.lt.s32.totalorder %s16, 1
      %s221 = scalar_select %p220, %s16, 1
      %s222 = smul.addr %s221, 2
      %s223 = smul.addr %s222, 8
      %s224 = scalar_lea.vmem %s5, %s223
      %v225 = vld [vmem:[%s219] sm:$0xff]
      %v226 = vld [vmem:[%s4] sm:$0xff]
      %v227 = vld [vmem:[%s4 + $0x8] sm:$0xff]
      %v228 = vld [vmem:[%s4 + $0x10] sm:$0x1]
      %v229 = vld [vmem:[%s4 + $0x18] sm:$0x1]
      %v231 = vcombine.high %v225, %v225
      %233 = vrot.lane.b32.xlu0 %v225, 17
      %v234 = vpop.permute.xlu0 %233
      %235 = vrot.lane.b32.xlu0 %v231, 17
      %v236 = vpop.permute.xlu0 %235
      %v237 = vlaneseq
      %v238 = vand.u32 %v237, 127
      %vm239 = vcmp.lt.s32.totalorder %v238, 17
      %v240 = vsel %vm239, %v234, %v236
      %v241 = vsel %vm239, %v236, %v234
      %v242 = vlaneseq
      %v243 = vshrl.u32 %v242, 7
      %v244 = vsub.s32 0, %v243
      %v245 = vrot.slane %v226, %v244
      %v246 = vlaneseq
      %v247 = vshrl.u32 %v246, 7
      %v248 = vsub.s32 0, %v247
      %v249 = vrot.slane %v227, %v248
      %v250 = vmul.f32 %v241, %v245
      %v251 = vmul.f32 %v240, %v249
      %252 = vrot.lane.b32.xlu0 %v225, 16
      %v253 = vpop.permute.xlu0 %252
      %254 = vrot.lane.b32.xlu0 %v231, 16
      %v255 = vpop.permute.xlu0 %254
      %vm256 = vcmp.lt.s32.totalorder %v238, 16
      %v257 = vsel %vm256, %v253, %v255
      %v258 = vsel %vm256, %v255, %v253
      %v259 = vlaneseq
      %v260 = vshrl.u32 %v259, 7
      %v261 = vsub.s32 1, %v260
      %v262 = vrot.slane %v226, %v261
      %v263 = vlaneseq
      %v264 = vshrl.u32 %v263, 7
      %v265 = vsub.s32 1, %v264
      %v266 = vrot.slane %v227, %v265
      %v267 = vmul.f32 %v258, %v262
      %v268 = vmul.f32 %v257, %v266
      %269 = vrot.lane.b32.xlu0 %v225, 15
      %v270 = vpop.permute.xlu0 %269
      %271 = vrot.lane.b32.xlu0 %v231, 15
      %v272 = vpop.permute.xlu0 %271
      %vm273 = vcmp.lt.s32.totalorder %v238, 15
      %v274 = vsel %vm273, %v270, %v272
      %v275 = vsel %vm273, %v272, %v270
      %v276 = vlaneseq
      %v277 = vshrl.u32 %v276, 7
      %v278 = vsub.s32 2, %v277
      %v279 = vrot.slane %v226, %v278
      %v280 = vlaneseq
      %v281 = vshrl.u32 %v280, 7
      %v282 = vsub.s32 2, %v281
      %v283 = vrot.slane %v227, %v282
      %v284 = vmul.f32 %v275, %v279
      %v285 = vmul.f32 %v274, %v283
      %286 = vrot.lane.b32.xlu0 %v225, 1
      %v287 = vpop.permute.xlu0 %286
      %288 = vrot.lane.b32.xlu0 %v231, 1
      %v289 = vpop.permute.xlu0 %288
      %vm290 = vcmp.lt.s32.totalorder %v238, 1
      %v291 = vsel %vm290, %v287, %v289
      %v292 = vsel %vm290, %v289, %v287
      %v293 = vlaneseq
      %v294 = vshrl.u32 %v293, 7
      %v295 = vsub.s32 3, %v294
      %v296 = vrot.slane %v226, %v295
      %v297 = vlaneseq
      %v298 = vshrl.u32 %v297, 7
      %v299 = vsub.s32 3, %v298
      %v300 = vrot.slane %v227, %v299
      %v301 = vmul.f32 %v292, %v296
      %v302 = vmul.f32 %v291, %v300
      %303 = vrot.lane.b32.xlu0 %v225, 127
      %v304 = vpop.permute.xlu0 %303
      %305 = vrot.lane.b32.xlu0 %v231, 127
      %v306 = vpop.permute.xlu0 %305
      %vm307 = vcmp.lt.s32.totalorder %v238, 127
      %v308 = vsel %vm307, %v304, %v306
      %v309 = vsel %vm307, %v306, %v304
      %v310 = vlaneseq
      %v311 = vshrl.u32 %v310, 7
      %v312 = vsub.s32 5, %v311
      %v313 = vrot.slane %v226, %v312
      %v314 = vlaneseq
      %v315 = vshrl.u32 %v314, 7
      %v316 = vsub.s32 5, %v315
      %v317 = vrot.slane %v227, %v316
      %v318 = vmul.f32 %v308, %v313
      %v319 = vmul.f32 %v309, %v317
      %320 = vrot.lane.b32.xlu0 %v225, 113
      %v321 = vpop.permute.xlu0 %320
      %322 = vrot.lane.b32.xlu0 %v231, 113
      %v323 = vpop.permute.xlu0 %322
      %vm324 = vcmp.lt.s32.totalorder %v238, 113
      %v325 = vsel %vm324, %v321, %v323
      %v326 = vsel %vm324, %v323, %v321
      %v327 = vlaneseq
      %v328 = vshrl.u32 %v327, 7
      %v329 = vsub.s32 6, %v328
      %v330 = vrot.slane %v226, %v329
      %v331 = vlaneseq
      %v332 = vshrl.u32 %v331, 7
      %v333 = vsub.s32 6, %v332
      %v334 = vrot.slane %v227, %v333
      %v335 = vmul.f32 %v325, %v330
      %v336 = vmul.f32 %v326, %v334
      %337 = vrot.lane.b32.xlu0 %v225, 112
      %v338 = vpop.permute.xlu0 %337
      %339 = vrot.lane.b32.xlu0 %v231, 112
      %v340 = vpop.permute.xlu0 %339
      %vm341 = vcmp.lt.s32.totalorder %v238, 112
      %v342 = vsel %vm341, %v338, %v340
      %v343 = vsel %vm341, %v340, %v338
      %v344 = vlaneseq
      %v345 = vshrl.u32 %v344, 7
      %v346 = vsub.s32 7, %v345
      %v347 = vrot.slane %v226, %v346
      %v348 = vlaneseq
      %v349 = vshrl.u32 %v348, 7
      %v350 = vsub.s32 7, %v349
      %v351 = vrot.slane %v227, %v350
      %v352 = vmul.f32 %v342, %v347
      %v353 = vmul.f32 %v343, %v351
      %354 = vrot.lane.b32.xlu0 %v225, 111
      %v355 = vpop.permute.xlu0 %354
      %356 = vrot.lane.b32.xlu0 %v231, 111
      %v357 = vpop.permute.xlu0 %356
      %vm358 = vcmp.lt.s32.totalorder %v238, 111
      %v359 = vsel %vm358, %v355, %v357
      %v360 = vsel %vm358, %v357, %v355
      %v361 = vlaneseq
      %v362 = vshrl.u32 %v361, 7
      %v363 = vsub.s32 0, %v362
      %v364 = vrot.slane %v228, %v363
      %v365 = vlaneseq
      %v366 = vshrl.u32 %v365, 7
      %v367 = vsub.s32 0, %v366
      %v368 = vrot.slane %v229, %v367
      %v369 = vmul.f32 %v359, %v364
      %v370 = vmul.f32 %v360, %v368
      %v373 = vrot.slane %v267, 4
      %v374 = vrot.slane %v268, 4
      %v379 = vrot.slane %v301, 4
      %v380 = vrot.slane %v302, 4
      %v385 = vrot.slane %v318, 4
      %v386 = vrot.slane %v319, 4
      %v391 = vrot.slane %v352, 4
      %v392 = vrot.slane %v353, 4
      %vm395 = vcmask 1043456
      %v396 = vsel %vm395, %v250, %v373
      %v397 = vsel %vm395, %v251, %v374
      %v398 = vsel %vm395, %v284, %v379
      %v399 = vsel %vm395, %v285, %v380
      %v400 = vsel %vm395, %v225, %v385
      %v401 = vsel %vm395, %v231, %v386
      %v402 = vsel %vm395, %v335, %v391
      %v403 = vsel %vm395, %v336, %v392
      %v404 = vld [vmem:[%s1] sm:$0xff]
      %v405 = vld [vmem:[%s1 + $0x8] sm:$0xff]
      %vm406 = vcmask 293888
      %v408 = vsel %vm406, %v404, 0
      %v411 = vsel %vm406, %v405, 0
      %v414 = vsel %vm395, %v369, 0
      %v417 = vsel %vm395, %v370, 0
      %419 = vmatprep.subr.mxu0 %v397
      %420 = vmatpush1.msra.mxu0 %v396
      %421 = vmatprep.subr.mxu0 %v399
      %422 = vmatpush1.msra.mxu0 %v398
      %423 = vmatprep.subr.mxu0 %v401
      %424 = vmatpush1.msra.mxu0 %v400
      %425 = vmatprep.subr.mxu0 %v403
      %426 = vmatpush1.msra.mxu0 %v402
      %427 = vmatprep.subr.mxu0 %v417
      %428 = vmatpush1.msra.mxu0 %v414
      %429 = vmatprep.subr.mxu0 0.0
      %430 = vmatpush1.msra.mxu0 0.0
      %431 = vmatprep.subr.mxu0 0.0
      %432 = vmatpush1.msra.mxu0 0.0
      %433 = vmatprep.subr.mxu0 0.0
      %434 = vmatpush1.msra.mxu0 0.0
      %435 = vmatprep.subr.mxu0 0.0
      %436 = vmatpush1.msra.mxu0 0.0
      %437 = vmatprep.subr.mxu0 0.0
      %438 = vmatpush1.msra.mxu0 0.0
      %439 = vmatprep.subr.mxu0 0.0
      %440 = vmatpush1.msra.mxu0 0.0
      %441 = vmatprep.subr.mxu0 0.0
      %442 = vmatpush1.msra.mxu0 0.0
      %443 = vmatprep.subr.mxu0 0.0
      %444 = vmatpush1.msra.mxu0 0.0
      %445 = vmatprep.subr.mxu0 0.0
      %446 = vmatpush1.msra.mxu0 0.0
      %447 = vmatprep.subr.mxu0 0.0
      %448 = vmatpush1.msra.mxu0 0.0
      %449 = vmatprep.subr.mxu0 0.0
      %450 = vmatpush1.msra.mxu0 0.0
      %451 = vmatprep.subr.mxu0 0.0
      %452 = vmatpush1.msra.mxu0 0.0
      %453 = vmatprep.subr.mxu0 0.0
      %454 = vmatpush1.msra.mxu0 0.0
      %455 = vmatprep.subr.mxu0 0.0
      %456 = vmatpush1.msra.mxu0 0.0
      %457 = vmatprep.subr.mxu0 0.0
      %458 = vmatpush1.msra.mxu0 0.0
      %459 = vmatprep.subr.mxu0 0.0
      %460 = vmatpush1.msra.mxu0 0.0
      %461 = vmatprep.subr.mxu0 0.0
      %462 = vmatpush1.msra.mxu0 0.0
      %463 = vmatprep.subr.mxu0 0.0
      %464 = vmatpush1.msra.mxu0 0.0
      %465 = vmatprep.subr.mxu0 0.0
      %466 = vmatpush1.msra.mxu0 0.0
      %467 = vmatprep.subr.mxu0 0.0
      %468 = vmatpush1.msra.mxu0 0.0
      %469 = vmatprep.subr.mxu0 0.0
      %470 = vmatpush1.msra.mxu0 0.0
      %471 = vmatprep.subr.mxu0 0.0
      %472 = vmatpush1.msra.mxu0 0.0
      %473 = vmatprep.subr.mxu0 0.0
      %474 = vmatpush1.msra.mxu0 0.0
      %475 = vmatprep.subr.mxu0 0.0
      %476 = vmatpush1.msra.mxu0 0.0
      %477 = vmatprep.subr.mxu0 0.0
      %478 = vmatpush1.msra.mxu0 0.0
      %479 = vmatprep.subr.mxu0 0.0
      %480 = vmatpush1.msra.mxu0 0.0
      %481 = vmatprep.subr.mxu0 0.0
      %482 = vmatpush1.msra.mxu0 0.0
      %483 = vmatprep.mubr.f32.mxu0 0.0
      %484 = vmatmul.mubr.f32.gmra.mrb[0].mxu0 %v408
      %v485 = vpop.f32.mrb[0].mxu0
      %v486 = vadd.f32 0.0, %v485
      %v487 = vpop.f32.mrb[0].mxu0
      %v488 = vadd.f32 0.0, %v487
      %489 = vmatprep.mubr.f32.mxu0 0.0
      %490 = vmatmul.mubr.f32.gmra.mrb[0].mxu0 %v411
      %v491 = vpop.f32.mrb[0].mxu0
      %v492 = vadd.f32 0.0, %v491
      %v493 = vpop.f32.mrb[0].mxu0
      %v494 = vadd.f32 0.0, %v493
      %495 = vdwg.mxu0
      %v496 = vld [vmem:[%s3] sm:$0xff]
      %498 = vset.pattern.permute.xlu0 0
      %499 = vperm.xlu0 %498, %v496
      %v500 = vpop.permute.xlu0 %499
      %v502 = vadd.f32 %v492, %v500
      %v503 = vadd.f32 %v494, %v500
      %v504 = vadd.f32 %v486, %v488
      %505 = vadd.xlane.f32.xlu0 %v504
      %v506 = vpop.xlane.xlu0 %505
      %v507 = vmul.f32 %v486, %v486
      %v508 = vmul.f32 %v488, %v488
      %v509 = vadd.f32 %v507, %v508
      %510 = vadd.xlane.f32.xlu0 %v509
      %v511 = vpop.xlane.xlu0 %510
      %v512 = vmul.f32 %v506, 0.00390625
      %v513 = vmul.f32 %v511, 0.00390625
      %v514 = vmul.f32 %v512, %v512
      %v515 = vsub.f32 %v513, %v514
      %v516 = vsub.f32 %v486, %v512
      %v517 = vsub.f32 %v488, %v512
      %v518 = vadd.f32 %v515, 1e-05
      %v519 = vrsqrt.pop %v518
      %v520 = vmul.f32 %v516, %v519
      %v521 = vmul.f32 %v517, %v519
      %v522 = vmax.f32 %v520, 0.0
      %v523 = vmax.f32 %v521, 0.0
      %v524 = vld [vmem:[%s2] sm:$0xff]
      %525 = vrot.lane.b32.xlu0 %v522, 17
      %v526 = vpop.permute.xlu0 %525
      %527 = vrot.lane.b32.xlu0 %v523, 17
      %v528 = vpop.permute.xlu0 %527
      %v529 = vsel %vm239, %v526, %v528
      %v530 = vsel %vm239, %v528, %v526
      %v531 = vmul.f32 %v530, %v245
      %v532 = vmul.f32 %v529, %v249
      %533 = vrot.lane.b32.xlu0 %v522, 16
      %v534 = vpop.permute.xlu0 %533
      %535 = vrot.lane.b32.xlu0 %v523, 16
      %v536 = vpop.permute.xlu0 %535
      %v537 = vsel %vm256, %v534, %v536
      %v538 = vsel %vm256, %v536, %v534
      %v539 = vmul.f32 %v538, %v262
      %v540 = vmul.f32 %v537, %v266
      %541 = vrot.lane.b32.xlu0 %v522, 15
      %v542 = vpop.permute.xlu0 %541
      %543 = vrot.lane.b32.xlu0 %v523, 15
      %v544 = vpop.permute.xlu0 %543
      %v545 = vsel %vm273, %v542, %v544
      %v546 = vsel %vm273, %v544, %v542
      %v547 = vmul.f32 %v546, %v279
      %v548 = vmul.f32 %v545, %v283
      %549 = vrot.lane.b32.xlu0 %v522, 1
      %v550 = vpop.permute.xlu0 %549
      %551 = vrot.lane.b32.xlu0 %v523, 1
      %v552 = vpop.permute.xlu0 %551
      %v553 = vsel %vm290, %v550, %v552
      %v554 = vsel %vm290, %v552, %v550
      %v555 = vmul.f32 %v554, %v296
      %v556 = vmul.f32 %v553, %v300
      %557 = vrot.lane.b32.xlu0 %v522, 127
      %v558 = vpop.permute.xlu0 %557
      %559 = vrot.lane.b32.xlu0 %v523, 127
      %v560 = vpop.permute.xlu0 %559
      %v561 = vsel %vm307, %v558, %v560
      %v562 = vsel %vm307, %v560, %v558
      %v563 = vmul.f32 %v561, %v313
      %v564 = vmul.f32 %v562, %v317
      %565 = vrot.lane.b32.xlu0 %v522, 113
      %v566 = vpop.permute.xlu0 %565
      %567 = vrot.lane.b32.xlu0 %v523, 113
      %v568 = vpop.permute.xlu0 %567
      %v569 = vsel %vm324, %v566, %v568
      %v570 = vsel %vm324, %v568, %v566
      %v571 = vmul.f32 %v569, %v330
      %v572 = vmul.f32 %v570, %v334
      %573 = vrot.lane.b32.xlu0 %v522, 112
      %v574 = vpop.permute.xlu0 %573
      %575 = vrot.lane.b32.xlu0 %v523, 112
      %v576 = vpop.permute.xlu0 %575
      %v577 = vsel %vm341, %v574, %v576
      %v578 = vsel %vm341, %v576, %v574
      %v579 = vmul.f32 %v577, %v347
      %v580 = vmul.f32 %v578, %v351
      %581 = vrot.lane.b32.xlu0 %v522, 111
      %v582 = vpop.permute.xlu0 %581
      %583 = vrot.lane.b32.xlu0 %v523, 111
      %v584 = vpop.permute.xlu0 %583
      %v585 = vsel %vm358, %v582, %v584
      %v586 = vsel %vm358, %v584, %v582
      %v587 = vmul.f32 %v585, %v364
      %v588 = vmul.f32 %v586, %v368
      %vm589 = vcmask 588800
      %v591 = vsel %vm589, %v524, 0
      %593 = vmatprep.subr.mxu0 %v532
      %594 = vmatpush1.msra.mxu0 %v531
      %595 = vmatprep.subr.mxu0 %v540
      %596 = vmatpush1.msra.mxu0 %v539
      %597 = vmatprep.subr.mxu0 %v548
      %598 = vmatpush1.msra.mxu0 %v547
      %599 = vmatprep.subr.mxu0 %v556
      %600 = vmatpush1.msra.mxu0 %v555
      %601 = vmatprep.subr.mxu0 %v523
      %602 = vmatpush1.msra.mxu0 %v522
      %603 = vmatprep.subr.mxu0 %v564
      %604 = vmatpush1.msra.mxu0 %v563
      %605 = vmatprep.subr.mxu0 %v572
      %606 = vmatpush1.msra.mxu0 %v571
      %607 = vmatprep.subr.mxu0 %v580
      %608 = vmatpush1.msra.mxu0 %v579
      %609 = vmatprep.subr.mxu0 %v588
      %610 = vmatpush1.msra.mxu0 %v587
      %611 = vmatprep.subr.mxu0 0.0
      %612 = vmatpush1.msra.mxu0 0.0
      %613 = vmatprep.subr.mxu0 0.0
      %614 = vmatpush1.msra.mxu0 0.0
      %615 = vmatprep.subr.mxu0 0.0
      %616 = vmatpush1.msra.mxu0 0.0
      %617 = vmatprep.subr.mxu0 0.0
      %618 = vmatpush1.msra.mxu0 0.0
      %619 = vmatprep.subr.mxu0 0.0
      %620 = vmatpush1.msra.mxu0 0.0
      %621 = vmatprep.subr.mxu0 0.0
      %622 = vmatpush1.msra.mxu0 0.0
      %623 = vmatprep.subr.mxu0 0.0
      %624 = vmatpush1.msra.mxu0 0.0
      %625 = vmatprep.subr.mxu0 0.0
      %626 = vmatpush1.msra.mxu0 0.0
      %627 = vmatprep.subr.mxu0 0.0
      %628 = vmatpush1.msra.mxu0 0.0
      %629 = vmatprep.subr.mxu0 0.0
      %630 = vmatpush1.msra.mxu0 0.0
      %631 = vmatprep.subr.mxu0 0.0
      %632 = vmatpush1.msra.mxu0 0.0
      %633 = vmatprep.subr.mxu0 0.0
      %634 = vmatpush1.msra.mxu0 0.0
      %635 = vmatprep.subr.mxu0 0.0
      %636 = vmatpush1.msra.mxu0 0.0
      %637 = vmatprep.subr.mxu0 0.0
      %638 = vmatpush1.msra.mxu0 0.0
      %639 = vmatprep.subr.mxu0 0.0
      %640 = vmatpush1.msra.mxu0 0.0
      %641 = vmatprep.subr.mxu0 0.0
      %642 = vmatpush1.msra.mxu0 0.0
      %643 = vmatprep.subr.mxu0 0.0
      %644 = vmatpush1.msra.mxu0 0.0
      %645 = vmatprep.subr.mxu0 0.0
      %646 = vmatpush1.msra.mxu0 0.0
      %647 = vmatprep.subr.mxu0 0.0
      %648 = vmatpush1.msra.mxu0 0.0
      %649 = vmatprep.subr.mxu0 0.0
      %650 = vmatpush1.msra.mxu0 0.0
      %651 = vmatprep.subr.mxu0 0.0
      %652 = vmatpush1.msra.mxu0 0.0
      %653 = vmatprep.subr.mxu0 0.0
      %654 = vmatpush1.msra.mxu0 0.0
      %655 = vmatprep.subr.mxu0 0.0
      %656 = vmatpush1.msra.mxu0 0.0
      %657 = vmatprep.mubr.f32.mxu0 0.0
      %658 = vmatmul.mubr.f32.gmra.mrb[0].mxu0 %v591
      %v659 = vpop.f32.mrb[0].mxu0
      %v660 = vadd.f32 0.0, %v659
      %v661 = vpop.f32.mrb[0].mxu0
      %v662 = vadd.f32 0.0, %v661
      %663 = vdwg.mxu0
      %v664 = vadd.f32 %v660, %v662
      %665 = vadd.xlane.f32.xlu0 %v664
      %v666 = vpop.xlane.xlu0 %665
      %v667 = vmul.f32 %v660, %v660
      %v668 = vmul.f32 %v662, %v662
      %v669 = vadd.f32 %v667, %v668
      %670 = vadd.xlane.f32.xlu0 %v669
      %v671 = vpop.xlane.xlu0 %670
      %v672 = vmul.f32 %v666, 0.00390625
      %v673 = vmul.f32 %v671, 0.00390625
      %v674 = vmul.f32 %v672, %v672
      %v675 = vsub.f32 %v673, %v674
      %v676 = vsub.f32 %v660, %v672
      %v677 = vsub.f32 %v662, %v672
      %v678 = vadd.f32 %v675, 1e-05
      %v679 = vrsqrt.pop %v678
      %v680 = vmul.f32 %v676, %v679
      %v681 = vmul.f32 %v677, %v679
      %v682 = vmax.f32 %v680, 0.0
      %v683 = vmax.f32 %v681, 0.0
      %v684 = vadd.f32 %v502, %v503
      %685 = vadd.xlane.f32.xlu0 %v684
      %v686 = vpop.xlane.xlu0 %685
      %v687 = vmul.f32 %v502, %v502
      %v688 = vmul.f32 %v503, %v503
      %v689 = vadd.f32 %v687, %v688
      %690 = vadd.xlane.f32.xlu0 %v689
      %v691 = vpop.xlane.xlu0 %690
      %v692 = vmul.f32 %v686, 0.00390625
      %v693 = vmul.f32 %v691, 0.00390625
      %v694 = vmul.f32 %v692, %v692
      %v695 = vsub.f32 %v693, %v694
      %v696 = vsub.f32 %v502, %v692
      %v697 = vsub.f32 %v503, %v692
      %v698 = vadd.f32 %v695, 1e-05
      %v699 = vrsqrt.pop %v698
      %v700 = vmul.f32 %v696, %v699
      %v701 = vmul.f32 %v697, %v699
      %v702 = vadd.f32 %v700, %v682
      %v703 = vadd.f32 %v701, %v683
      %v704 = vmax.f32 %v702, 0.0
      %v705 = vmax.f32 %v703, 0.0
      %706 = vst [vmem:[%s224] sm:$0xff] %v704
      %707 = vst [vmem:[%s224 + $0x8] sm:$0xff] %v705
      %p708 = scmp.lt.s32.totalorder %s16, 1
      %s709 = scalar_select %p708, %s16, 1
      %s710 = smul.addr %s709, 2
      %s711 = smul.addr %s710, 8
      %s712 = scalar_lea.vmem %s5, %s711
      // Predicated region
      $region41: #{residual_block.1} parent=39 // pred_check
        %p713 = pneg %p144
      $region42: #{residual_block.1} parent=39 // pred_check_branch
        %715 = sbr.rel (%p713) target = $region44
      $region43: #{residual_block.1} parent=39 // pred_region
        _
      $region44: #{residual_block.1} parent=39 // pred_fallthru
        _
    $region40: #{residual_block.1} parent=5 // pred_fallthru
      _
    %p716 = scmp.le.s32.totalorder 2, %s11
    // Predicated region
    $region45: #{residual_block.1} parent=5 // pred_check
      %p717 = pneg %p716
    $region46: #{residual_block.1} parent=5 // pred_check_branch
      %719 = sbr.rel (%p717) target = $region48
    $region47: #{residual_block.1} parent=5 // pred_region
      %s720 = ssub.s32 %s11, 2
      // Predicated region
      $region49: #{residual_block.1} parent=47 // pred_check
        %p721 = pneg %p150
      $region50: #{residual_block.1} parent=47 // pred_check_branch
        %723 = sbr.rel (%p721) target = $region52
      $region51: #{residual_block.1} parent=47 // pred_region
        %p724 = scmp.lt.s32.totalorder %s17, 1
        %s725 = scalar_select %p724, %s17, 1
        %s726 = smul.addr %s725, 2
        %s727 = smul.addr %s726, 8
        %s728 = scalar_lea.vmem %s5, %s727
      $region52: #{residual_block.1} parent=47 // pred_fallthru
        _
    $region48: #{residual_block.1} parent=5 // pred_fallthru
      _
  $region6: #{residual_block.1} parent=0 // loop_footer
    %s15 = sadd.s32 1, %s11
  $region7: #{residual_block.1} parent=0 // loop_footer_branch
    %10 = sbr.rel target = $region3
  $region8: #{residual_block.1} parent=0 // loop_exit
    _

</llo_original>
